<compile_context>
chip_gen: v7x
topology: tpu7x:2x2x1
jax: 0.10.0
libtpu: 0.0.40
codegen_flags: <defaults>
</compile_context>

<pallas_src>
import math

import jax
import jax.numpy as jnp
from jax import lax
from jax.experimental import pallas as pl
from jax.experimental.pallas import tpu as pltpu


def siren_kernel(x_ref, w_ref, b_ref, o_ref):
    # (tm, K) contract (N, K) on K -> (tm, N); MXU handles the transposed RHS.
    acc = lax.dot_general(
        x_ref[...], w_ref[...],
        dimension_numbers=(((1,), (1,)), ((), ())),
        preferred_element_type=jnp.float32)
    acc = acc + b_ref[...]                 # f32 bias broadcast over rows
    o_ref[...] = jnp.sin(acc).astype(o_ref.dtype)


def _round_up(x, m):
    return ((x + m - 1) // m) * m


def siren_forward(x, weight_folded, bias_folded, *, tm=512,
                  compute_dtype=None, out_dtype=None):
    """x: (..., dim_in); weight_folded: (dim_out, dim_in) = w0*W;
    bias_folded: (dim_out,) = w0*b (fold once at init, see fold_w0_into_params)."""
    orig_shape = x.shape
    dim_out, dim_in = weight_folded.shape
    assert orig_shape[-1] == dim_in

    if compute_dtype is None:
        compute_dtype = x.dtype
    if out_dtype is None:
        out_dtype = x.dtype

    x2d = x.reshape(-1, dim_in)
    M = x2d.shape[0]

    # Row tile: as large as possible (cap tm), 8-aligned; pad M instead of assert.
    tm_eff = min(tm, _round_up(M, 8))
    # Keep >= 2 row tiles when cheap so v7x's two TensorCores both get work.
    if _round_up(M, tm_eff) // tm_eff < 2 and tm_eff >= 16 and (tm_eff // 2) % 8 == 0:
        tm_eff //= 2
    M_pad = _round_up(M, tm_eff)
    if M_pad != M:
        x2d = jnp.pad(x2d, ((0, M_pad - M), (0, 0)))
    grid_m = M_pad // tm_eff

    xk = x2d.astype(compute_dtype)
    wk = weight_folded.astype(compute_dtype)
    b2d = bias_folded.reshape(1, dim_out).astype(jnp.float32)

    in_bytes = jnp.dtype(compute_dtype).itemsize
    out_bytes = jnp.dtype(out_dtype).itemsize

    # VMEM estimate: double-buffered x/out tiles + resident W + bias.
    vmem_est = (2 * tm_eff * dim_in * in_bytes
                + dim_out * dim_in * in_bytes
                + 2 * tm_eff * dim_out * out_bytes
                + dim_out * 4)
    vmem_limit = int(min(96 << 20, max(32 << 20, 2 * vmem_est)))

    cost = pl.CostEstimate(
        flops=2 * M_pad * dim_out * dim_in,
        transcendentals=M_pad * dim_out,
        bytes_accessed=(M_pad * dim_in * in_bytes
                        + dim_out * dim_in * in_bytes
                        + dim_out * 4
                        + M_pad * dim_out * out_bytes))

    out = pl.pallas_call(
        siren_kernel,
        out_shape=jax.ShapeDtypeStruct((M_pad, dim_out), out_dtype),
        grid_spec=pltpu.PrefetchScalarGridSpec(
            num_scalar_prefetch=0,
            grid=(grid_m,),
            in_specs=[
                pl.BlockSpec((tm_eff, dim_in), lambda i: (i, 0)),   # x row tile
                pl.BlockSpec((dim_out, dim_in), lambda i: (0, 0)),  # resident W
                pl.BlockSpec((1, dim_out), lambda i: (0, 0)),       # resident bias
            ],
            out_specs=pl.BlockSpec((tm_eff, dim_out), lambda i: (i, 0)),
        ),
        compiler_params=pltpu.CompilerParams(
            dimension_semantics=("parallel",),
            vmem_limit_bytes=vmem_limit),
        cost_estimate=cost,
    )(xk, wk, b2d)

    if M_pad != M:
        out = out[:M]
    return out.reshape(*orig_shape[:-1], dim_out)


def init_siren_params(key, dim_in, dim_out, w0=30.0, c=6.0, is_first=False):
    w_std = (1.0 / dim_in) if is_first else (math.sqrt(c / dim_in) / w0)
    weight = jax.random.uniform(
        key, (dim_out, dim_in), minval=-w_std, maxval=w_std, dtype=jnp.float32)
    bias = jnp.zeros((dim_out,), dtype=jnp.float32)   # bias.zero_()
    return weight, bias


def fold_w0_into_params(weight, bias, w0):
    """One-time, init-side folding of w0 (NOT per call): sin(w0*(xW^T+b)) ==
    sin(x(w0 W)^T + w0 b). Drops the per-element w0 multiply in the kernel."""
    return weight * w0, bias * w0


if __name__ == "__main__":
    # Small shapes consistent with an MLP/INR layer: batch of coordinate rows.
    B, S = 2, 64                 # 2 "images" x 64 sampled coordinates
    dim_in, dim_out = 64, 128
    w0, c = 30.0, 6.0

    key = jax.random.PRNGKey(0)
    k_x, k_w = jax.random.split(key)

    x = jax.random.normal(k_x, (B, S, dim_in), dtype=jnp.float32)
    weight, bias = init_siren_params(k_w, dim_in, dim_out, w0=w0, c=c,
                                     is_first=False)
    w_folded, b_folded = fold_w0_into_params(weight, bias, w0)  # once, at init

    # f32 compute path — tight check vs PyTorch semantics sin(w0*(x@W^T + b)).
    out = jax.block_until_ready(siren_forward(x, w_folded, b_folded))
    ref = jnp.sin(w0 * (x.reshape(-1, dim_in) @ weight.T + bias))
    ref = ref.reshape(B, S, dim_out)
    assert out.shape == (B, S, dim_out)
    assert jnp.allclose(out, ref, atol=1e-5, rtol=1e-5), "mismatch vs reference (f32)"

    # bf16 compute path (HBM-bandwidth relief; w0~30 amplifies input rounding,
    # so use a loose tolerance — keep the first layer in f32 in real stacks).
    out_bf16 = jax.block_until_ready(
        siren_forward(x, w_folded, b_folded, compute_dtype=jnp.bfloat16))
    assert jnp.max(jnp.abs(out_bf16 - ref)) < 0.15, "mismatch vs reference (bf16)"

    print("KERNEL_OK")
</pallas_src>

<mosaic_0001>
module attributes {stable_mosaic.version = 11 : i64} {
  func.func @siren_kernel(%arg0: i32, %arg1: memref<64x64xf32, #tpu.memory_space<vmem>>, %arg2: memref<128x64xf32, #tpu.memory_space<vmem>>, %arg3: memref<1x128xf32, #tpu.memory_space<vmem>>, %arg4: memref<64x128xf32, #tpu.memory_space<vmem>>) attributes {dimension_semantics = [#tpu.dimension_semantics<parallel>], iteration_bounds = array<i64: 2>, scalar_prefetch = 0 : i64, scratch_operands = 0 : i64, tpu.core_type = #tpu.core_type<tc>, window_params = [{transform_indices = @transform_0, window_bounds = array<i64: 64, 64>}, {pipeline_mode = #tpu.pipeline_mode<synchronous>, transform_indices = @transform_1, window_bounds = array<i64: 128, 64>}, {pipeline_mode = #tpu.pipeline_mode<synchronous>, transform_indices = @transform_2, window_bounds = array<i64: 1, 128>}, {transform_indices = @transform_3, window_bounds = array<i64: 64, 128>}]} {
    %c0 = arith.constant 0 : index
    %c0_0 = arith.constant 0 : index
    %0 = vector.load %arg1[%c0, %c0_0] : memref<64x64xf32, #tpu.memory_space<vmem>>, vector<64x64xf32>
    %c0_1 = arith.constant 0 : index
    %c0_2 = arith.constant 0 : index
    %1 = vector.load %arg2[%c0_1, %c0_2] : memref<128x64xf32, #tpu.memory_space<vmem>>, vector<128x64xf32>
    %cst = arith.constant dense<0.000000e+00> : vector<64x128xf32>
    %2 = tpu.matmul %0, %1, %cst {dimension_numbers = #tpu.dot_dimension_numbers<[1], [1], [0], [0], [0, 0, 1, 0], [], []>} : vector<64x64xf32>, vector<128x64xf32>, vector<64x128xf32> -> vector<64x128xf32>
    %c0_3 = arith.constant 0 : index
    %c0_4 = arith.constant 0 : index
    %3 = vector.load %arg3[%c0_3, %c0_4] : memref<1x128xf32, #tpu.memory_space<vmem>>, vector<1x128xf32>
    %4 = vector.broadcast %3 : vector<1x128xf32> to vector<64x128xf32>
    %5 = arith.addf %2, %4 : vector<64x128xf32>
    %6 = math.sin %5 : vector<64x128xf32>
    %c0_5 = arith.constant 0 : index
    %c0_6 = arith.constant 0 : index
    %7 = vector.load %arg4[%c0_5, %c0_6] : memref<64x128xf32, #tpu.memory_space<vmem>>, vector<64x128xf32>
    tpu.vector_store %arg4[%c0_5, %c0_6], %6 {strides = array<i32>} : memref<64x128xf32, #tpu.memory_space<vmem>>, vector<64x128xf32>,
    return
  }
  func.func @transform_0(%arg0: i32) -> (i32, i32) {
    %c0_i32 = arith.constant 0 : i32
    %c0_i32_0 = arith.constant 0 : i32
    return %arg0, %c0_i32 : i32, i32
  }
  func.func @transform_1(%arg0: i32) -> (i32, i32) {
    %c0_i32 = arith.constant 0 : i32
    %c0_i32_0 = arith.constant 0 : i32
    %c0_i32_1 = arith.constant 0 : i32
    return %c0_i32, %c0_i32_0 : i32, i32
  }
  func.func @transform_2(%arg0: i32) -> (i32, i32) {
    %c0_i32 = arith.constant 0 : i32
    %c0_i32_0 = arith.constant 0 : i32
    %c0_i32_1 = arith.constant 0 : i32
    return %c0_i32, %c0_i32_0 : i32, i32
  }
  func.func @transform_3(%arg0: i32) -> (i32, i32) {
    %c0_i32 = arith.constant 0 : i32
    %c0_i32_0 = arith.constant 0 : i32
    return %arg0, %c0_i32 : i32, i32
  }
}

</mosaic_0001>

<llo_original>
// kernel: tpu_custom_call.1
$region0: #{tpu_custom_call.1}
  #allocation0 [shape = 'u32[]', space=smem, size = 0x4, offset = 0x4, fixed_abs, tag = 'smem constant byte address 0x4 - core index']
  #allocation1 [shape = 'u32[144,128]{1,0:T(1,128)}', space=vmem, size = 0x12000, scoped, tag = 'internal scratch']
  %s0 = inlined_call_operand.vmem [shape: f32[128,64], index: 0, kind: input, shape index: {}]
  %s1 = inlined_call_operand.vmem [shape: f32[128,64], index: 1, kind: input, shape index: {}]
  %s2 = inlined_call_operand.vmem [shape: f32[1,128], index: 2, kind: input, shape index: {}]
  %s3 = inlined_call_operand.hbm [shape: f32[128,128], index: 3, kind: output, shape index: {}]
  %s4 = sld [smem:[#allocation0]]
  $region45: #{tpu_custom_call.1} parent=0
    _
  %s6 = ssub.s32 1, %s4
  %s7 = scalar_select 0, %s6, %s4
  $region1: #{tpu_custom_call.1} parent=0
    #allocation2 [shape = 'u8[65536]{0}', space=vmem, size = 0x10000, scoped, tag = 'output window, operand 0']
    #allocation3 [shape = 's32[2]{0}', space=sflag, size = 0x8, scoped, tag = 'scoped memory for tpu_custom_call.1']
    %8 = vsyncpa [#allocation3], 0
    %s9 = scalar_lea.sflag [#allocation3], 1
    %10 = vsyncpa %s9, 0
    loop: start=0, step=1, limit=4
    $region2: #{tpu_custom_call.1} parent=1 // loop_pre_header
      _
    $region3: #{tpu_custom_call.1} parent=1 // loop_header
      %s12 = sphi 0, %s16
      %p13 = scmp.ge.s32.totalorder %s12, 4
      %s22 = sphi 0, %s24
      %s25 = sphi 0, %s22
      %s26 = sphi 0, %s25
      %s42 = sphi 0, %s26
      %s46 = sphi 0, %s46
      %s48 = sphi 0, %s46
      %s49 = sphi 0, %s48
      %s63 = sphi 0, %s49
      %s67 = sphi 0, %s67
      %s69 = sphi 0, %s67
      %s70 = sphi 0, %s69
      %s84 = sphi 0, %s70
      %s90 = sphi 0, %s92
      %s93 = sphi 0, %s90
      %s94 = sphi 0, %s93
      %s110 = sphi 0, %s94
    $region4: #{tpu_custom_call.1} parent=1 // loop_header_branch
      %15 = sbr.rel (%p13) target = $region8
    $region5: #{tpu_custom_call.1} parent=1 // loop_body
      %s17 = ssub.s32 %s12, 1
      %s18 = ssub.s32 %s12, 2
      %s19 = sadd.s32 %s12, 1
      %s20 = ssub.s32 %s12, %s19
      %p21 = scmp.eq.s32.totalorder %s20, 0
      %s23 = sadd.s32 %s22, 1
      %s24 = scalar_select %p21, %s22, %s23
      %p27 = pneg %p21
      %p28 = scmp.eq.s32.totalorder %s12, 1
      %p29 = por %p27, %p28
      %p30 = scmp.ne.s32.totalorder %s22, %s25
      %p31 = scmp.eq.s32.totalorder %s12, 0
      %p32 = por %p30, %p31
      %p33 = scmp.ne.s32.totalorder %s22, %s25
      %p34 = scmp.eq.s32.totalorder %s17, 1
      %p35 = por %p33, %p34
      %p36 = scmp.ne.s32.totalorder %s25, %s26
      %p37 = scmp.eq.s32.totalorder %s17, 0
      %p38 = por %p36, %p37
      %p39 = scmp.ne.s32.totalorder %s25, %s26
      %p40 = scmp.eq.s32.totalorder %s18, 1
      %p41 = por %p39, %p40
      %p43 = scmp.ne.s32.totalorder %s26, %s42
      %p44 = scmp.eq.s32.totalorder %s18, 0
      %p45 = por %p43, %p44
      %s47 = sadd.s32 %s46, 1
      %p50 = scmp.eq.s32.totalorder %s12, 1
      %p51 = scmp.ne.s32.totalorder %s46, %s48
      %p52 = scmp.eq.s32.totalorder %s12, 0
      %p53 = por %p51, %p52
      %p54 = scmp.ne.s32.totalorder %s46, %s48
      %p55 = scmp.eq.s32.totalorder %s17, 1
      %p56 = por %p54, %p55
      %p57 = scmp.ne.s32.totalorder %s48, %s49
      %p58 = scmp.eq.s32.totalorder %s17, 0
      %p59 = por %p57, %p58
      %p60 = scmp.ne.s32.totalorder %s48, %s49
      %p61 = scmp.eq.s32.totalorder %s18, 1
      %p62 = por %p60, %p61
      %p64 = scmp.ne.s32.totalorder %s49, %s63
      %p65 = scmp.eq.s32.totalorder %s18, 0
      %p66 = por %p64, %p65
      %s68 = sadd.s32 %s67, 1
      %p71 = scmp.eq.s32.totalorder %s12, 1
      %p72 = scmp.ne.s32.totalorder %s67, %s69
      %p73 = scmp.eq.s32.totalorder %s12, 0
      %p74 = por %p72, %p73
      %p75 = scmp.ne.s32.totalorder %s67, %s69
      %p76 = scmp.eq.s32.totalorder %s17, 1
      %p77 = por %p75, %p76
      %p78 = scmp.ne.s32.totalorder %s69, %s70
      %p79 = scmp.eq.s32.totalorder %s17, 0
      %p80 = por %p78, %p79
      %p81 = scmp.ne.s32.totalorder %s69, %s70
      %p82 = scmp.eq.s32.totalorder %s18, 1
      %p83 = por %p81, %p82
      %p85 = scmp.ne.s32.totalorder %s70, %s84
      %p86 = scmp.eq.s32.totalorder %s18, 0
      %p87 = por %p85, %p86
      %s88 = ssub.s32 %s12, %s19
      %p89 = scmp.eq.s32.totalorder %s88, 0
      %s91 = sadd.s32 %s90, 1
      %s92 = scalar_select %p89, %s90, %s91
      %p95 = pneg %p89
      %p96 = scmp.eq.s32.totalorder %s12, 1
      %p97 = por %p95, %p96
      %p98 = scmp.ne.s32.totalorder %s90, %s93
      %p99 = scmp.eq.s32.totalorder %s12, 0
      %p100 = por %p98, %p99
      %p101 = scmp.ne.s32.totalorder %s90, %s93
      %p102 = scmp.eq.s32.totalorder %s17, 1
      %p103 = por %p101, %p102
      %p104 = scmp.ne.s32.totalorder %s93, %s94
      %p105 = scmp.eq.s32.totalorder %s17, 0
      %p106 = por %p104, %p105
      %p107 = scmp.ne.s32.totalorder %s93, %s94
      %p108 = scmp.eq.s32.totalorder %s18, 1
      %p109 = por %p107, %p108
      %p111 = scmp.ne.s32.totalorder %s94, %s110
      %p112 = scmp.eq.s32.totalorder %s18, 0
      %p113 = por %p111, %p112
      %p114 = scmp.le.s32.totalorder 1, %s12
      %p115 = scmp.lt.s32.totalorder %s12, 3
      %p116 = pnand %p114, %p115
      %p117 = pneg %p116
      // Predicated region
      $region9: #{tpu_custom_call.1} parent=5 // pred_check
        _
      $region10: #{tpu_custom_call.1} parent=5 // pred_check_branch
        %119 = sbr.rel (%p116) target = $region12
      $region11: #{tpu_custom_call.1} parent=5 // pred_region
        %s120 = ssub.s32 %s12, 1
        // Predicated region
        $region13: #{tpu_custom_call.1} parent=11 // pred_check
          %p121 = pneg %p59
        $region14: #{tpu_custom_call.1} parent=11 // pred_check_branch
          %123 = sbr.rel (%p121) target = $region16
        $region15: #{tpu_custom_call.1} parent=11 // pred_region
          _
        $region16: #{tpu_custom_call.1} parent=11 // pred_fallthru
          _
        // Predicated region
        $region17: #{tpu_custom_call.1} parent=11 // pred_check
          %p124 = pneg %p80
        $region18: #{tpu_custom_call.1} parent=11 // pred_check_branch
          %126 = sbr.rel (%p124) target = $region20
        $region19: #{tpu_custom_call.1} parent=11 // pred_region
          _
        $region20: #{tpu_custom_call.1} parent=11 // pred_fallthru
          _
      $region12: #{tpu_custom_call.1} parent=5 // pred_fallthru
        _
      %p127 = scmp.lt.s32.totalorder %s12, 2
      // Predicated region
      $region21: #{tpu_custom_call.1} parent=5 // pred_check
        %p128 = pneg %p127
      $region22: #{tpu_custom_call.1} parent=5 // pred_check_branch
        %130 = sbr.rel (%p128) target = $region24
      $region23: #{tpu_custom_call.1} parent=5 // pred_region
        // Predicated region
        $region25: #{tpu_custom_call.1} parent=23 // pred_check
          %p131 = pneg %p32
        $region26: #{tpu_custom_call.1} parent=23 // pred_check_branch
          %133 = sbr.rel (%p131) target = $region28
        $region27: #{tpu_custom_call.1} parent=23 // pred_region
          %s134 = smul.u32 8, %s12
          %p135 = scmp.lt.s32.totalorder %s134, 15
          %s136 = scalar_select %p135, %s134, 15
          %s137 = smul.addr %s136, 8
          %s138 = scalar_lea.vmem %s0, %s137
          %s139 = smul.u32 8, %s12
        $region28: #{tpu_custom_call.1} parent=23 // pred_fallthru
          _
      $region24: #{tpu_custom_call.1} parent=5 // pred_fallthru
        _
      %p140 = scmp.le.s32.totalorder 1, %s12
      %p141 = scmp.lt.s32.totalorder %s12, 3
      %p142 = pnand %p140, %p141
      %p143 = pneg %p142
      // Predicated region
      $region29: #{tpu_custom_call.1} parent=5 // pred_check
        _
      $region30: #{tpu_custom_call.1} parent=5 // pred_check_branch
        %145 = sbr.rel (%p142) target = $region32
      $region31: #{tpu_custom_call.1} parent=5 // pred_region
        %s146 = ssub.s32 %s12, 1
        %s147 = smul.u32 8, %s17
        %p148 = scmp.lt.s32.totalorder %s147, 15
        %s149 = scalar_select %p148, %s147, 15
        %s150 = smul.addr %s149, 8
        %s151 = scalar_lea.vmem %s0, %s150
        %p152 = pneg %p38
        %p153 = pneg %p35
        %p154 = pneg %p59
        %p155 = pneg %p56
        %p156 = pneg %p80
        %p157 = pneg %p77
        %p158 = pneg %p106
        %p159 = pneg %p103
        %s160 = sand.u32 %s93, 1
        %s161 = scalar_lea.sflag [#allocation3], %s160
        %s162 = sand.u32 %s93, 1
        %s163 = smul.addr %s162, 64
        %s164 = scalar_lea.vmem [#allocation2], %s163
        %s165 = smul.u32 8, %s17
        %p166 = scmp.lt.s32.totalorder %s165, 15
        %s167 = scalar_select %p166, %s165, 15
        %s168 = smul.addr %s167, 8
        %s169 = scalar_lea.vmem %s0, %s168
        %s170 = smul.u32 8, %s17
        %s171 = smul.u32 8, %s17
        %v172 = vld [vmem:[%s169] sm:$0xff]
        %v173 = vld [vmem:[%s169 + $0x8] sm:$0xff]
        %v174 = vld [vmem:[%s169 + $0x10] sm:$0xff]
        %v175 = vld [vmem:[%s169 + $0x18] sm:$0xff]
        %v176 = vld [vmem:[%s169 + $0x20] sm:$0xff]
        %v177 = vld [vmem:[%s169 + $0x28] sm:$0xff]
        %v178 = vld [vmem:[%s169 + $0x30] sm:$0xff]
        %v179 = vld [vmem:[%s169 + $0x38] sm:$0xff]
        %v180 = vld [vmem:[%s1] sm:$0xff]
        %v181 = vld [vmem:[%s1 + $0x8] sm:$0xff]
        %v182 = vld [vmem:[%s1 + $0x10] sm:$0xff]
        %v183 = vld [vmem:[%s1 + $0x18] sm:$0xff]
        %v184 = vld [vmem:[%s1 + $0x20] sm:$0xff]
        %v185 = vld [vmem:[%s1 + $0x28] sm:$0xff]
        %v186 = vld [vmem:[%s1 + $0x30] sm:$0xff]
        %v187 = vld [vmem:[%s1 + $0x38] sm:$0xff]
        %v188 = vld [vmem:[%s1 + $0x40] sm:$0xff]
        %v189 = vld [vmem:[%s1 + $0x48] sm:$0xff]
        %v190 = vld [vmem:[%s1 + $0x50] sm:$0xff]
        %v191 = vld [vmem:[%s1 + $0x58] sm:$0xff]
        %v192 = vld [vmem:[%s1 + $0x60] sm:$0xff]
        %v193 = vld [vmem:[%s1 + $0x68] sm:$0xff]
        %v194 = vld [vmem:[%s1 + $0x70] sm:$0xff]
        %v195 = vld [vmem:[%s1 + $0x78] sm:$0xff]
        %v196 = vld [vmem:[%s2] sm:$0x1]
        %v198 = vlaneseq
        %v199 = vshrl.u32 %v198, 7
        %v200 = vsub.s32 0, %v199
        %v201 = vrot.slane %v196, %v200
        %vm203 = vcmask 523264
        %v205 = vsel %vm203, %v172, 0
        %v208 = vsel %vm203, %v173, 0
        %v211 = vsel %vm203, %v174, 0
        %v214 = vsel %vm203, %v175, 0
        %v217 = vsel %vm203, %v176, 0
        %v220 = vsel %vm203, %v177, 0
        %v223 = vsel %vm203, %v178, 0
        %v226 = vsel %vm203, %v179, 0
        %v229 = vsel %vm203, %v180, 0
        %v232 = vsel %vm203, %v181, 0
        %v235 = vsel %vm203, %v182, 0
        %v238 = vsel %vm203, %v183, 0
        %v241 = vsel %vm203, %v184, 0
        %v244 = vsel %vm203, %v185, 0
        %v247 = vsel %vm203, %v186, 0
        %v250 = vsel %vm203, %v187, 0
        %v253 = vsel %vm203, %v188, 0
        %v256 = vsel %vm203, %v189, 0
        %v259 = vsel %vm203, %v190, 0
        %v262 = vsel %vm203, %v191, 0
        %v265 = vsel %vm203, %v192, 0
        %v268 = vsel %vm203, %v193, 0
        %v271 = vsel %vm203, %v194, 0
        %v274 = vsel %vm203, %v195, 0
        %276 = vmatprep.subr.mxu0 0.0
        %277 = vmatpush1.xpose.msra.mxu0 %v229
        %278 = vmatprep.subr.mxu0 0.0
        %279 = vmatpush1.xpose.msra.mxu0 %v232
        %280 = vmatprep.subr.mxu0 0.0
        %281 = vmatpush1.xpose.msra.mxu0 %v235
        %282 = vmatprep.subr.mxu0 0.0
        %283 = vmatpush1.xpose.msra.mxu0 %v238
        %284 = vmatprep.subr.mxu0 0.0
        %285 = vmatpush1.xpose.msra.mxu0 %v241
        %286 = vmatprep.subr.mxu0 0.0
        %287 = vmatpush1.xpose.msra.mxu0 %v244
        %288 = vmatprep.subr.mxu0 0.0
        %289 = vmatpush1.xpose.msra.mxu0 %v247
        %290 = vmatprep.subr.mxu0 0.0
        %291 = vmatpush1.xpose.msra.mxu0 %v250
        %292 = vmatprep.subr.mxu0 0.0
        %293 = vmatpush1.xpose.msra.mxu0 %v253
        %294 = vmatprep.subr.mxu0 0.0
        %295 = vmatpush1.xpose.msra.mxu0 %v256
        %296 = vmatprep.subr.mxu0 0.0
        %297 = vmatpush1.xpose.msra.mxu0 %v259
        %298 = vmatprep.subr.mxu0 0.0
        %299 = vmatpush1.xpose.msra.mxu0 %v262
        %300 = vmatprep.subr.mxu0 0.0
        %301 = vmatpush1.xpose.msra.mxu0 %v265
        %302 = vmatprep.subr.mxu0 0.0
        %303 = vmatpush1.xpose.msra.mxu0 %v268
        %304 = vmatprep.subr.mxu0 0.0
        %305 = vmatpush1.xpose.msra.mxu0 %v271
        %306 = vmatprep.subr.mxu0 0.0
        %307 = vmatpush1.xpose.msra.mxu0 %v274
        %308 = vmatprep.subr.mxu0 0.0
        %309 = vmatpush1.xpose.msra.mxu0 0.0
        %310 = vmatprep.subr.mxu0 0.0
        %311 = vmatpush1.xpose.msra.mxu0 0.0
        %312 = vmatprep.subr.mxu0 0.0
        %313 = vmatpush1.xpose.msra.mxu0 0.0
        %314 = vmatprep.subr.mxu0 0.0
        %315 = vmatpush1.xpose.msra.mxu0 0.0
        %316 = vmatprep.subr.mxu0 0.0
        %317 = vmatpush1.xpose.msra.mxu0 0.0
        %318 = vmatprep.subr.mxu0 0.0
        %319 = vmatpush1.xpose.msra.mxu0 0.0
        %320 = vmatprep.subr.mxu0 0.0
        %321 = vmatpush1.xpose.msra.mxu0 0.0
        %322 = vmatprep.subr.mxu0 0.0
        %323 = vmatpush1.xpose.msra.mxu0 0.0
        %324 = vmatprep.subr.mxu0 0.0
        %325 = vmatpush1.xpose.msra.mxu0 0.0
        %326 = vmatprep.subr.mxu0 0.0
        %327 = vmatpush1.xpose.msra.mxu0 0.0
        %328 = vmatprep.subr.mxu0 0.0
        %329 = vmatpush1.xpose.msra.mxu0 0.0
        %330 = vmatprep.subr.mxu0 0.0
        %331 = vmatpush1.xpose.msra.mxu0 0.0
        %332 = vmatprep.subr.mxu0 0.0
        %333 = vmatpush1.xpose.msra.mxu0 0.0
        %334 = vmatprep.subr.mxu0 0.0
        %335 = vmatpush1.xpose.msra.mxu0 0.0
        %336 = vmatprep.subr.mxu0 0.0
        %337 = vmatpush1.xpose.msra.mxu0 0.0
        %338 = vmatprep.subr.mxu0 0.0
        %339 = vmatpush1.xpose.msra.mxu0 0.0
        %340 = vmatprep.mubr.f32.mxu0 0.0
        %341 = vmatmul.mubr.f32.gmra.mrb[0].mxu0 %v205
        %v342 = vpop.f32.mrb[0].mxu0
        %v343 = vadd.f32 %v201, %v342
        %v344 = vpop.f32.mrb[0].mxu0
        %345 = vmatprep.mubr.f32.mxu0 0.0
        %346 = vmatmul.mubr.f32.gmra.mrb[0].mxu0 %v208
        %v347 = vpop.f32.mrb[0].mxu0
        %v348 = vadd.f32 %v201, %v347
        %v349 = vpop.f32.mrb[0].mxu0
        %350 = vmatprep.mubr.f32.mxu0 0.0
        %351 = vmatmul.mubr.f32.gmra.mrb[0].mxu0 %v211
        %v352 = vpop.f32.mrb[0].mxu0
        %v353 = vadd.f32 %v201, %v352
        %v354 = vpop.f32.mrb[0].mxu0
        %355 = vmatprep.mubr.f32.mxu0 0.0
        %356 = vmatmul.mubr.f32.gmra.mrb[0].mxu0 %v214
        %v357 = vpop.f32.mrb[0].mxu0
        %v358 = vadd.f32 %v201, %v357
        %v359 = vpop.f32.mrb[0].mxu0
        %360 = vmatprep.mubr.f32.mxu0 0.0
        %361 = vmatmul.mubr.f32.gmra.mrb[0].mxu0 %v217
        %v362 = vpop.f32.mrb[0].mxu0
        %v363 = vadd.f32 %v201, %v362
        %v364 = vpop.f32.mrb[0].mxu0
        %365 = vmatprep.mubr.f32.mxu0 0.0
        %366 = vmatmul.mubr.f32.gmra.mrb[0].mxu0 %v220
        %v367 = vpop.f32.mrb[0].mxu0
        %v368 = vadd.f32 %v201, %v367
        %v369 = vpop.f32.mrb[0].mxu0
        %370 = vmatprep.mubr.f32.mxu0 0.0
        %371 = vmatmul.mubr.f32.gmra.mrb[0].mxu0 %v223
        %v372 = vpop.f32.mrb[0].mxu0
        %v373 = vadd.f32 %v201, %v372
        %v374 = vpop.f32.mrb[0].mxu0
        %375 = vmatprep.mubr.f32.mxu0 0.0
        %376 = vmatmul.mubr.f32.gmra.mrb[0].mxu0 %v226
        %v377 = vpop.f32.mrb[0].mxu0
        %v378 = vadd.f32 %v201, %v377
        %v379 = vpop.f32.mrb[0].mxu0
        %380 = vdwg.mxu0
        %v381 = vand.u32 2147483647, %v343
        %vm382 = vcmp.le.f32.partialorder %v381, 0.7853982
        %vm383 = vcmp.lt.s32.totalorder %v343, 0
        %v384 = vand.u32 %v343, 2139095040
        %v385 = vshrl.u32 %v384, 23
        %v386 = vsub.s32 %v385, 127
        %v387 = vand.u32 2147483647, %v343
        %v388 = vand.u32 %v387, 8388607
        %v389 = vor.u32 %v388, 8388608
        %v390 = vsub.s32 0, %v389
        %v391 = vadd.s32 %v386, 1
        %vm392 = vcmp.gt.s32.totalorder %v391, 0
        %v393 = vsel %vm392, %v391, 0
        %v394 = vshrl.u32 %v393, 5
        %v395 = vand.u32 %v393, 31
        %v396 = vsub.s32 32, %v395
        %v397 = vshrl.u32 683565275, %v396
        %v398 = vshll.u32 683565275, %v395
        %v399 = vshrl.u32 2475754826, %v396
        %v400 = vor.u32 %v398, %v399
        %v401 = vshll.u32 2475754826, %v395
        %v402 = vshrl.u32 2131351028, %v396
        %v403 = vor.u32 %v401, %v402
        %v404 = vshll.u32 2131351028, %v395
        %v405 = vshrl.u32 2102212464, %v396
        %v406 = vor.u32 %v404, %v405
        %v407 = vshll.u32 2102212464, %v395
        %v408 = vshrl.u32 920167782, %v396
        %v409 = vor.u32 %v407, %v408
        %v410 = vshll.u32 920167782, %v395
        %v411 = vshrl.u32 1326507024, %v396
        %v412 = vor.u32 %v410, %v411
        %vm413 = vcmp.lt.s32.totalorder %v394, 1
        %vm414 = vcmp.lt.s32.totalorder %v394, 2
        %vm415 = vcmp.lt.s32.totalorder %v394, 3
        %vm416 = vcmp.lt.s32.totalorder %v394, 4
        %v417 = vsel %vm413, %v397, %v400
        %v418 = vsel %vm416, %v406, 2102212464
        %v419 = vsel %vm415, %v403, %v418
        %v420 = vsel %vm414, %v417, %v419
        %v421 = vsel %vm413, %v400, %v403
        %v422 = vsel %vm416, %v409, 920167782
        %v423 = vsel %vm415, %v406, %v422
        %v424 = vsel %vm414, %v421, %v423
        %v425 = vsel %vm413, %v403, %v406
        %v426 = vsel %vm416, %v412, 1326507024
        %v427 = vsel %vm415, %v409, %v426
        %v428 = vsel %vm414, %v425, %v427
        %v429 = vshll.u32 %v389, 8
        %v430 = vmul.u32.u64.compose %v429, %v428
        %v431 = vextract.low.u32 %v430
        %v432 = vextract.high.u32 %v430
        %v433 = vmul.u32.u64.compose %v429, %v424
        %v434 = vextract.low.u32 %v433
        %v435 = vextract.high.u32 %v433
        %v436 = vmul.u32 %v429, %v420
        %v437 = vadd.s32 %v432, %v434
        %vm438 = vc.u32 %v432, %v434
        %v439 = vadd.s32 %v435, 1
        %v440 = vsel %vm438, %v439, %v435
        %v441 = vadd.s32 %v436, %v440
        %v442 = vadd.s32 %v441, 536870912
        %v443 = vshrl.u32 %v442, 30
        %v444 = vshll.u32 %v443, 30
        %v445 = vsub.s32 %v441, %v444
        %vm446 = vcmp.lt.s32.totalorder %v445, 0
        %v447 = vsub.s32 0, %v445
        %v448 = vsel %vm446, %v447, %v445
        %v449 = vclz %v448
        %v450 = vsub.s32 %v449, 2
        %vm451 = vcmp.gt.s32.totalorder 0, %v450
        %v452 = vsel %vm451, 0, %v450
        %v453 = vsub.s32 32, %v452
        %v454 = vshll.u32 %v445, %v452
        %v455 = vshrl.u32 %v437, %v453
        %v456 = vor.u32 %v454, %v455
        %v457 = vsub.s32 4294967266, %v452
        %v458 = vadd.s32 %v457, 127
        %v459 = vshll.u32 %v458, 23
        %v460 = vor.u32 4788187, %v459
        %v461 = vand.u32 2147483647, %v460
        %v463 = vcvt.s32.f32 %v456
        %v464 = vmul.f32 %v463, %v461
        %v465 = vxor.u32 %v464, 2147483648
        %v466 = vsel %vm383, %v465, %v464
        %v467 = vsub.s32 4, %v443
        %v468 = vsel %vm383, %v467, %v443
        %v469 = vsel %vm382, %v343, %v466
        %v470 = vsel %vm382, 0, %v468
        %v471 = vcosq.f32.pop %v469
        %v472 = vsinq.f32.pop %v469
        %vm473 = vweird.f32 %v343
        %v474 = vadd.s32 %v470, 3
        %v475 = vand.u32 %v474, 3
        %vm476 = vcmp.lt.s32.totalorder %v475, 2
        %vm477 = vcmp.eq.s32.totalorder %v475, 0
        %v478 = vxor.u32 %v472, 2147483648
        %v479 = vsel %vm477, %v471, %v478
        %vm480 = vcmp.eq.s32.totalorder %v475, 2
        %v481 = vxor.u32 %v471, 2147483648
        %v482 = vsel %vm480, %v481, %v472
        %v483 = vsel %vm476, %v479, %v482
        %v484 = vsel %vm473, nan, %v483
        %v485 = vand.u32 2147483647, %v348
        %vm486 = vcmp.le.f32.partialorder %v485, 0.7853982
        %vm487 = vcmp.lt.s32.totalorder %v348, 0
        %v488 = vand.u32 %v348, 2139095040
        %v489 = vshrl.u32 %v488, 23
        %v490 = vsub.s32 %v489, 127
        %v491 = vand.u32 2147483647, %v348
        %v492 = vand.u32 %v491, 8388607
        %v493 = vor.u32 %v492, 8388608
        %v494 = vsub.s32 0, %v493
        %v495 = vadd.s32 %v490, 1
        %vm496 = vcmp.gt.s32.totalorder %v495, 0
        %v497 = vsel %vm496, %v495, 0
        %v498 = vshrl.u32 %v497, 5
        %v499 = vand.u32 %v497, 31
        %v500 = vsub.s32 32, %v499
        %v501 = vshrl.u32 683565275, %v500
        %v502 = vshll.u32 683565275, %v499
        %v503 = vshrl.u32 2475754826, %v500
        %v504 = vor.u32 %v502, %v503
        %v505 = vshll.u32 2475754826, %v499
        %v506 = vshrl.u32 2131351028, %v500
        %v507 = vor.u32 %v505, %v506
        %v508 = vshll.u32 2131351028, %v499
        %v509 = vshrl.u32 2102212464, %v500
        %v510 = vor.u32 %v508, %v509
        %v511 = vshll.u32 2102212464, %v499
        %v512 = vshrl.u32 920167782, %v500
        %v513 = vor.u32 %v511, %v512
        %v514 = vshll.u32 920167782, %v499
        %v515 = vshrl.u32 1326507024, %v500
        %v516 = vor.u32 %v514, %v515
        %vm517 = vcmp.lt.s32.totalorder %v498, 1
        %vm518 = vcmp.lt.s32.totalorder %v498, 2
        %vm519 = vcmp.lt.s32.totalorder %v498, 3
        %vm520 = vcmp.lt.s32.totalorder %v498, 4
        %v521 = vsel %vm517, %v501, %v504
        %v522 = vsel %vm520, %v510, 2102212464
        %v523 = vsel %vm519, %v507, %v522
        %v524 = vsel %vm518, %v521, %v523
        %v525 = vsel %vm517, %v504, %v507
        %v526 = vsel %vm520, %v513, 920167782
        %v527 = vsel %vm519, %v510, %v526
        %v528 = vsel %vm518, %v525, %v527
        %v529 = vsel %vm517, %v507, %v510
        %v530 = vsel %vm520, %v516, 1326507024
        %v531 = vsel %vm519, %v513, %v530
        %v532 = vsel %vm518, %v529, %v531
        %v533 = vshll.u32 %v493, 8
        %v534 = vmul.u32.u64.compose %v533, %v532
        %v535 = vextract.low.u32 %v534
        %v536 = vextract.high.u32 %v534
        %v537 = vmul.u32.u64.compose %v533, %v528
        %v538 = vextract.low.u32 %v537
        %v539 = vextract.high.u32 %v537
        %v540 = vmul.u32 %v533, %v524
        %v541 = vadd.s32 %v536, %v538
        %vm542 = vc.u32 %v536, %v538
        %v543 = vadd.s32 %v539, 1
        %v544 = vsel %vm542, %v543, %v539
        %v545 = vadd.s32 %v540, %v544
        %v546 = vadd.s32 %v545, 536870912
        %v547 = vshrl.u32 %v546, 30
        %v548 = vshll.u32 %v547, 30
        %v549 = vsub.s32 %v545, %v548
        %vm550 = vcmp.lt.s32.totalorder %v549, 0
        %v551 = vsub.s32 0, %v549
        %v552 = vsel %vm550, %v551, %v549
        %v553 = vclz %v552
        %v554 = vsub.s32 %v553, 2
        %vm555 = vcmp.gt.s32.totalorder 0, %v554
        %v556 = vsel %vm555, 0, %v554
        %v557 = vsub.s32 32, %v556
        %v558 = vshll.u32 %v549, %v556
        %v559 = vshrl.u32 %v541, %v557
        %v560 = vor.u32 %v558, %v559
        %v561 = vsub.s32 4294967266, %v556
        %v562 = vadd.s32 %v561, 127
        %v563 = vshll.u32 %v562, 23
        %v564 = vor.u32 4788187, %v563
        %v565 = vand.u32 2147483647, %v564
        %v567 = vcvt.s32.f32 %v560
        %v568 = vmul.f32 %v567, %v565
        %v569 = vxor.u32 %v568, 2147483648
        %v570 = vsel %vm487, %v569, %v568
        %v571 = vsub.s32 4, %v547
        %v572 = vsel %vm487, %v571, %v547
        %v573 = vsel %vm486, %v348, %v570
        %v574 = vsel %vm486, 0, %v572
        %v575 = vcosq.f32.pop %v573
        %v576 = vsinq.f32.pop %v573
        %vm577 = vweird.f32 %v348
        %v578 = vadd.s32 %v574, 3
        %v579 = vand.u32 %v578, 3
        %vm580 = vcmp.lt.s32.totalorder %v579, 2
        %vm581 = vcmp.eq.s32.totalorder %v579, 0
        %v582 = vxor.u32 %v576, 2147483648
        %v583 = vsel %vm581, %v575, %v582
        %vm584 = vcmp.eq.s32.totalorder %v579, 2
        %v585 = vxor.u32 %v575, 2147483648
        %v586 = vsel %vm584, %v585, %v576
        %v587 = vsel %vm580, %v583, %v586
        %v588 = vsel %vm577, nan, %v587
        %v589 = vand.u32 2147483647, %v353
        %vm590 = vcmp.le.f32.partialorder %v589, 0.7853982
        %vm591 = vcmp.lt.s32.totalorder %v353, 0
        %v592 = vand.u32 %v353, 2139095040
        %v593 = vshrl.u32 %v592, 23
        %v594 = vsub.s32 %v593, 127
        %v595 = vand.u32 2147483647, %v353
        %v596 = vand.u32 %v595, 8388607
        %v597 = vor.u32 %v596, 8388608
        %v598 = vsub.s32 0, %v597
        %v599 = vadd.s32 %v594, 1
        %vm600 = vcmp.gt.s32.totalorder %v599, 0
        %v601 = vsel %vm600, %v599, 0
        %v602 = vshrl.u32 %v601, 5
        %v603 = vand.u32 %v601, 31
        %v604 = vsub.s32 32, %v603
        %v605 = vshrl.u32 683565275, %v604
        %v606 = vshll.u32 683565275, %v603
        %v607 = vshrl.u32 2475754826, %v604
        %v608 = vor.u32 %v606, %v607
        %v609 = vshll.u32 2475754826, %v603
        %v610 = vshrl.u32 2131351028, %v604
        %v611 = vor.u32 %v609, %v610
        %v612 = vshll.u32 2131351028, %v603
        %v613 = vshrl.u32 2102212464, %v604
        %v614 = vor.u32 %v612, %v613
        %v615 = vshll.u32 2102212464, %v603
        %v616 = vshrl.u32 920167782, %v604
        %v617 = vor.u32 %v615, %v616
        %v618 = vshll.u32 920167782, %v603
        %v619 = vshrl.u32 1326507024, %v604
        %v620 = vor.u32 %v618, %v619
        %vm621 = vcmp.lt.s32.totalorder %v602, 1
        %vm622 = vcmp.lt.s32.totalorder %v602, 2
        %vm623 = vcmp.lt.s32.totalorder %v602, 3
        %vm624 = vcmp.lt.s32.totalorder %v602, 4
        %v625 = vsel %vm621, %v605, %v608
        %v626 = vsel %vm624, %v614, 2102212464
        %v627 = vsel %vm623, %v611, %v626
        %v628 = vsel %vm622, %v625, %v627
        %v629 = vsel %vm621, %v608, %v611
        %v630 = vsel %vm624, %v617, 920167782
        %v631 = vsel %vm623, %v614, %v630
        %v632 = vsel %vm622, %v629, %v631
        %v633 = vsel %vm621, %v611, %v614
        %v634 = vsel %vm624, %v620, 1326507024
        %v635 = vsel %vm623, %v617, %v634
        %v636 = vsel %vm622, %v633, %v635
        %v637 = vshll.u32 %v597, 8
        %v638 = vmul.u32.u64.compose %v637, %v636
        %v639 = vextract.low.u32 %v638
        %v640 = vextract.high.u32 %v638
        %v641 = vmul.u32.u64.compose %v637, %v632
        %v642 = vextract.low.u32 %v641
        %v643 = vextract.high.u32 %v641
        %v644 = vmul.u32 %v637, %v628
        %v645 = vadd.s32 %v640, %v642
        %vm646 = vc.u32 %v640, %v642
        %v647 = vadd.s32 %v643, 1
        %v648 = vsel %vm646, %v647, %v643
        %v649 = vadd.s32 %v644, %v648
        %v650 = vadd.s32 %v649, 536870912
        %v651 = vshrl.u32 %v650, 30
        %v652 = vshll.u32 %v651, 30
        %v653 = vsub.s32 %v649, %v652
        %vm654 = vcmp.lt.s32.totalorder %v653, 0
        %v655 = vsub.s32 0, %v653
        %v656 = vsel %vm654, %v655, %v653
        %v657 = vclz %v656
        %v658 = vsub.s32 %v657, 2
        %vm659 = vcmp.gt.s32.totalorder 0, %v658
        %v660 = vsel %vm659, 0, %v658
        %v661 = vsub.s32 32, %v660
        %v662 = vshll.u32 %v653, %v660
        %v663 = vshrl.u32 %v645, %v661
        %v664 = vor.u32 %v662, %v663
        %v665 = vsub.s32 4294967266, %v660
        %v666 = vadd.s32 %v665, 127
        %v667 = vshll.u32 %v666, 23
        %v668 = vor.u32 4788187, %v667
        %v669 = vand.u32 2147483647, %v668
        %v671 = vcvt.s32.f32 %v664
        %v672 = vmul.f32 %v671, %v669
        %v673 = vxor.u32 %v672, 2147483648
        %v674 = vsel %vm591, %v673, %v672
        %v675 = vsub.s32 4, %v651
        %v676 = vsel %vm591, %v675, %v651
        %v677 = vsel %vm590, %v353, %v674
        %v678 = vsel %vm590, 0, %v676
        %v679 = vcosq.f32.pop %v677
        %v680 = vsinq.f32.pop %v677
        %vm681 = vweird.f32 %v353
        %v682 = vadd.s32 %v678, 3
        %v683 = vand.u32 %v682, 3
        %vm684 = vcmp.lt.s32.totalorder %v683, 2
        %vm685 = vcmp.eq.s32.totalorder %v683, 0
        %v686 = vxor.u32 %v680, 2147483648
        %v687 = vsel %vm685, %v679, %v686
        %vm688 = vcmp.eq.s32.totalorder %v683, 2
        %v689 = vxor.u32 %v679, 2147483648
        %v690 = vsel %vm688, %v689, %v680
        %v691 = vsel %vm684, %v687, %v690
        %v692 = vsel %vm681, nan, %v691
        %v693 = vand.u32 2147483647, %v358
        %vm694 = vcmp.le.f32.partialorder %v693, 0.7853982
        %vm695 = vcmp.lt.s32.totalorder %v358, 0
        %v696 = vand.u32 %v358, 2139095040
        %v697 = vshrl.u32 %v696, 23
        %v698 = vsub.s32 %v697, 127
        %v699 = vand.u32 2147483647, %v358
        %v700 = vand.u32 %v699, 8388607
        %v701 = vor.u32 %v700, 8388608
        %v702 = vsub.s32 0, %v701
        %v703 = vadd.s32 %v698, 1
        %vm704 = vcmp.gt.s32.totalorder %v703, 0
        %v705 = vsel %vm704, %v703, 0
        %v706 = vshrl.u32 %v705, 5
        %v707 = vand.u32 %v705, 31
        %v708 = vsub.s32 32, %v707
        %v709 = vshrl.u32 683565275, %v708
        %v710 = vshll.u32 683565275, %v707
        %v711 = vshrl.u32 2475754826, %v708
        %v712 = vor.u32 %v710, %v711
        %v713 = vshll.u32 2475754826, %v707
        %v714 = vshrl.u32 2131351028, %v708
        %v715 = vor.u32 %v713, %v714
        %v716 = vshll.u32 2131351028, %v707
        %v717 = vshrl.u32 2102212464, %v708
        %v718 = vor.u32 %v716, %v717
        %v719 = vshll.u32 2102212464, %v707
        %v720 = vshrl.u32 920167782, %v708
        %v721 = vor.u32 %v719, %v720
        %v722 = vshll.u32 920167782, %v707
        %v723 = vshrl.u32 1326507024, %v708
        %v724 = vor.u32 %v722, %v723
        %vm725 = vcmp.lt.s32.totalorder %v706, 1
        %vm726 = vcmp.lt.s32.totalorder %v706, 2
        %vm727 = vcmp.lt.s32.totalorder %v706, 3
        %vm728 = vcmp.lt.s32.totalorder %v706, 4
        %v729 = vsel %vm725, %v709, %v712
        %v730 = vsel %vm728, %v718, 2102212464
        %v731 = vsel %vm727, %v715, %v730
        %v732 = vsel %vm726, %v729, %v731
        %v733 = vsel %vm725, %v712, %v715
        %v734 = vsel %vm728, %v721, 920167782
        %v735 = vsel %vm727, %v718, %v734
        %v736 = vsel %vm726, %v733, %v735
        %v737 = vsel %vm725, %v715, %v718
        %v738 = vsel %vm728, %v724, 1326507024
        %v739 = vsel %vm727, %v721, %v738
        %v740 = vsel %vm726, %v737, %v739
        %v741 = vshll.u32 %v701, 8
        %v742 = vmul.u32.u64.compose %v741, %v740
        %v743 = vextract.low.u32 %v742
        %v744 = vextract.high.u32 %v742
        %v745 = vmul.u32.u64.compose %v741, %v736
        %v746 = vextract.low.u32 %v745
        %v747 = vextract.high.u32 %v745
        %v748 = vmul.u32 %v741, %v732
        %v749 = vadd.s32 %v744, %v746
        %vm750 = vc.u32 %v744, %v746
        %v751 = vadd.s32 %v747, 1
        %v752 = vsel %vm750, %v751, %v747
        %v753 = vadd.s32 %v748, %v752
        %v754 = vadd.s32 %v753, 536870912
        %v755 = vshrl.u32 %v754, 30
        %v756 = vshll.u32 %v755, 30
        %v757 = vsub.s32 %v753, %v756
        %vm758 = vcmp.lt.s32.totalorder %v757, 0
        %v759 = vsub.s32 0, %v757
        %v760 = vsel %vm758, %v759, %v757
        %v761 = vclz %v760
        %v762 = vsub.s32 %v761, 2
        %vm763 = vcmp.gt.s32.totalorder 0, %v762
        %v764 = vsel %vm763, 0, %v762
        %v765 = vsub.s32 32, %v764
        %v766 = vshll.u32 %v757, %v764
        %v767 = vshrl.u32 %v749, %v765
        %v768 = vor.u32 %v766, %v767
        %v769 = vsub.s32 4294967266, %v764
        %v770 = vadd.s32 %v769, 127
        %v771 = vshll.u32 %v770, 23
        %v772 = vor.u32 4788187, %v771
        %v773 = vand.u32 2147483647, %v772
        %v775 = vcvt.s32.f32 %v768
        %v776 = vmul.f32 %v775, %v773
        %v777 = vxor.u32 %v776, 2147483648
        %v778 = vsel %vm695, %v777, %v776
        %v779 = vsub.s32 4, %v755
        %v780 = vsel %vm695, %v779, %v755
        %v781 = vsel %vm694, %v358, %v778
        %v782 = vsel %vm694, 0, %v780
        %v783 = vcosq.f32.pop %v781
        %v784 = vsinq.f32.pop %v781
        %vm785 = vweird.f32 %v358
        %v786 = vadd.s32 %v782, 3
        %v787 = vand.u32 %v786, 3
        %vm788 = vcmp.lt.s32.totalorder %v787, 2
        %vm789 = vcmp.eq.s32.totalorder %v787, 0
        %v790 = vxor.u32 %v784, 2147483648
        %v791 = vsel %vm789, %v783, %v790
        %vm792 = vcmp.eq.s32.totalorder %v787, 2
        %v793 = vxor.u32 %v783, 2147483648
        %v794 = vsel %vm792, %v793, %v784
        %v795 = vsel %vm788, %v791, %v794
        %v796 = vsel %vm785, nan, %v795
        %v797 = vand.u32 2147483647, %v363
        %vm798 = vcmp.le.f32.partialorder %v797, 0.7853982
        %vm799 = vcmp.lt.s32.totalorder %v363, 0
        %v800 = vand.u32 %v363, 2139095040
        %v801 = vshrl.u32 %v800, 23
        %v802 = vsub.s32 %v801, 127
        %v803 = vand.u32 2147483647, %v363
        %v804 = vand.u32 %v803, 8388607
        %v805 = vor.u32 %v804, 8388608
        %v806 = vsub.s32 0, %v805
        %v807 = vadd.s32 %v802, 1
        %vm808 = vcmp.gt.s32.totalorder %v807, 0
        %v809 = vsel %vm808, %v807, 0
        %v810 = vshrl.u32 %v809, 5
        %v811 = vand.u32 %v809, 31
        %v812 = vsub.s32 32, %v811
        %v813 = vshrl.u32 683565275, %v812
        %v814 = vshll.u32 683565275, %v811
        %v815 = vshrl.u32 2475754826, %v812
        %v816 = vor.u32 %v814, %v815
        %v817 = vshll.u32 2475754826, %v811
        %v818 = vshrl.u32 2131351028, %v812
        %v819 = vor.u32 %v817, %v818
        %v820 = vshll.u32 2131351028, %v811
        %v821 = vshrl.u32 2102212464, %v812
        %v822 = vor.u32 %v820, %v821
        %v823 = vshll.u32 2102212464, %v811
        %v824 = vshrl.u32 920167782, %v812
        %v825 = vor.u32 %v823, %v824
        %v826 = vshll.u32 920167782, %v811
        %v827 = vshrl.u32 1326507024, %v812
        %v828 = vor.u32 %v826, %v827
        %vm829 = vcmp.lt.s32.totalorder %v810, 1
        %vm830 = vcmp.lt.s32.totalorder %v810, 2
        %vm831 = vcmp.lt.s32.totalorder %v810, 3
        %vm832 = vcmp.lt.s32.totalorder %v810, 4
        %v833 = vsel %vm829, %v813, %v816
        %v834 = vsel %vm832, %v822, 2102212464
        %v835 = vsel %vm831, %v819, %v834
        %v836 = vsel %vm830, %v833, %v835
        %v837 = vsel %vm829, %v816, %v819
        %v838 = vsel %vm832, %v825, 920167782
        %v839 = vsel %vm831, %v822, %v838
        %v840 = vsel %vm830, %v837, %v839
        %v841 = vsel %vm829, %v819, %v822
        %v842 = vsel %vm832, %v828, 1326507024
        %v843 = vsel %vm831, %v825, %v842
        %v844 = vsel %vm830, %v841, %v843
        %v845 = vshll.u32 %v805, 8
        %v846 = vmul.u32.u64.compose %v845, %v844
        %v847 = vextract.low.u32 %v846
        %v848 = vextract.high.u32 %v846
        %v849 = vmul.u32.u64.compose %v845, %v840
        %v850 = vextract.low.u32 %v849
        %v851 = vextract.high.u32 %v849
        %v852 = vmul.u32 %v845, %v836
        %v853 = vadd.s32 %v848, %v850
        %vm854 = vc.u32 %v848, %v850
        %v855 = vadd.s32 %v851, 1
        %v856 = vsel %vm854, %v855, %v851
        %v857 = vadd.s32 %v852, %v856
        %v858 = vadd.s32 %v857, 536870912
        %v859 = vshrl.u32 %v858, 30
        %v860 = vshll.u32 %v859, 30
        %v861 = vsub.s32 %v857, %v860
        %vm862 = vcmp.lt.s32.totalorder %v861, 0
        %v863 = vsub.s32 0, %v861
        %v864 = vsel %vm862, %v863, %v861
        %v865 = vclz %v864
        %v866 = vsub.s32 %v865, 2
        %vm867 = vcmp.gt.s32.totalorder 0, %v866
        %v868 = vsel %vm867, 0, %v866
        %v869 = vsub.s32 32, %v868
        %v870 = vshll.u32 %v861, %v868
        %v871 = vshrl.u32 %v853, %v869
        %v872 = vor.u32 %v870, %v871
        %v873 = vsub.s32 4294967266, %v868
        %v874 = vadd.s32 %v873, 127
        %v875 = vshll.u32 %v874, 23
        %v876 = vor.u32 4788187, %v875
        %v877 = vand.u32 2147483647, %v876
        %v879 = vcvt.s32.f32 %v872
        %v880 = vmul.f32 %v879, %v877
        %v881 = vxor.u32 %v880, 2147483648
        %v882 = vsel %vm799, %v881, %v880
        %v883 = vsub.s32 4, %v859
        %v884 = vsel %vm799, %v883, %v859
        %v885 = vsel %vm798, %v363, %v882
        %v886 = vsel %vm798, 0, %v884
        %v887 = vcosq.f32.pop %v885
        %v888 = vsinq.f32.pop %v885
        %vm889 = vweird.f32 %v363
        %v890 = vadd.s32 %v886, 3
        %v891 = vand.u32 %v890, 3
        %vm892 = vcmp.lt.s32.totalorder %v891, 2
        %vm893 = vcmp.eq.s32.totalorder %v891, 0
        %v894 = vxor.u32 %v888, 2147483648
        %v895 = vsel %vm893, %v887, %v894
        %vm896 = vcmp.eq.s32.totalorder %v891, 2
        %v897 = vxor.u32 %v887, 2147483648
        %v898 = vsel %vm896, %v897, %v888
        %v899 = vsel %vm892, %v895, %v898
        %v900 = vsel %vm889, nan, %v899
        %v901 = vand.u32 2147483647, %v368
        %vm902 = vcmp.le.f32.partialorder %v901, 0.7853982
        %vm903 = vcmp.lt.s32.totalorder %v368, 0
        %v904 = vand.u32 %v368, 2139095040
        %v905 = vshrl.u32 %v904, 23
        %v906 = vsub.s32 %v905, 127
        %v907 = vand.u32 2147483647, %v368
        %v908 = vand.u32 %v907, 8388607
        %v909 = vor.u32 %v908, 8388608
        %v910 = vsub.s32 0, %v909
        %v911 = vadd.s32 %v906, 1
        %vm912 = vcmp.gt.s32.totalorder %v911, 0
        %v913 = vsel %vm912, %v911, 0
        %v914 = vshrl.u32 %v913, 5
        %v915 = vand.u32 %v913, 31
        %v916 = vsub.s32 32, %v915
        %v917 = vshrl.u32 683565275, %v916
        %v918 = vshll.u32 683565275, %v915
        %v919 = vshrl.u32 2475754826, %v916
        %v920 = vor.u32 %v918, %v919
        %v921 = vshll.u32 2475754826, %v915
        %v922 = vshrl.u32 2131351028, %v916
        %v923 = vor.u32 %v921, %v922
        %v924 = vshll.u32 2131351028, %v915
        %v925 = vshrl.u32 2102212464, %v916
        %v926 = vor.u32 %v924, %v925
        %v927 = vshll.u32 2102212464, %v915
        %v928 = vshrl.u32 920167782, %v916
        %v929 = vor.u32 %v927, %v928
        %v930 = vshll.u32 920167782, %v915
        %v931 = vshrl.u32 1326507024, %v916
        %v932 = vor.u32 %v930, %v931
        %vm933 = vcmp.lt.s32.totalorder %v914, 1
        %vm934 = vcmp.lt.s32.totalorder %v914, 2
        %vm935 = vcmp.lt.s32.totalorder %v914, 3
        %vm936 = vcmp.lt.s32.totalorder %v914, 4
        %v937 = vsel %vm933, %v917, %v920
        %v938 = vsel %vm936, %v926, 2102212464
        %v939 = vsel %vm935, %v923, %v938
        %v940 = vsel %vm934, %v937, %v939
        %v941 = vsel %vm933, %v920, %v923
        %v942 = vsel %vm936, %v929, 920167782
        %v943 = vsel %vm935, %v926, %v942
        %v944 = vsel %vm934, %v941, %v943
        %v945 = vsel %vm933, %v923, %v926
        %v946 = vsel %vm936, %v932, 1326507024
        %v947 = vsel %vm935, %v929, %v946
        %v948 = vsel %vm934, %v945, %v947
        %v949 = vshll.u32 %v909, 8
        %v950 = vmul.u32.u64.compose %v949, %v948
        %v951 = vextract.low.u32 %v950
        %v952 = vextract.high.u32 %v950
        %v953 = vmul.u32.u64.compose %v949, %v944
        %v954 = vextract.low.u32 %v953
        %v955 = vextract.high.u32 %v953
        %v956 = vmul.u32 %v949, %v940
        %v957 = vadd.s32 %v952, %v954
        %vm958 = vc.u32 %v952, %v954
        %v959 = vadd.s32 %v955, 1
        %v960 = vsel %vm958, %v959, %v955
        %v961 = vadd.s32 %v956, %v960
        %v962 = vadd.s32 %v961, 536870912
        %v963 = vshrl.u32 %v962, 30
        %v964 = vshll.u32 %v963, 30
        %v965 = vsub.s32 %v961, %v964
        %vm966 = vcmp.lt.s32.totalorder %v965, 0
        %v967 = vsub.s32 0, %v965
        %v968 = vsel %vm966, %v967, %v965
        %v969 = vclz %v968
        %v970 = vsub.s32 %v969, 2
        %vm971 = vcmp.gt.s32.totalorder 0, %v970
        %v972 = vsel %vm971, 0, %v970
        %v973 = vsub.s32 32, %v972
        %v974 = vshll.u32 %v965, %v972
        %v975 = vshrl.u32 %v957, %v973
        %v976 = vor.u32 %v974, %v975
        %v977 = vsub.s32 4294967266, %v972
        %v978 = vadd.s32 %v977, 127
        %v979 = vshll.u32 %v978, 23
        %v980 = vor.u32 4788187, %v979
        %v981 = vand.u32 2147483647, %v980
        %v983 = vcvt.s32.f32 %v976
        %v984 = vmul.f32 %v983, %v981
        %v985 = vxor.u32 %v984, 2147483648
        %v986 = vsel %vm903, %v985, %v984
        %v987 = vsub.s32 4, %v963
        %v988 = vsel %vm903, %v987, %v963
        %v989 = vsel %vm902, %v368, %v986
        %v990 = vsel %vm902, 0, %v988
        %v991 = vcosq.f32.pop %v989
        %v992 = vsinq.f32.pop %v989
        %vm993 = vweird.f32 %v368
        %v994 = vadd.s32 %v990, 3
        %v995 = vand.u32 %v994, 3
        %vm996 = vcmp.lt.s32.totalorder %v995, 2
        %vm997 = vcmp.eq.s32.totalorder %v995, 0
        %v998 = vxor.u32 %v992, 2147483648
        %v999 = vsel %vm997, %v991, %v998
        %vm1000 = vcmp.eq.s32.totalorder %v995, 2
        %v1001 = vxor.u32 %v991, 2147483648
        %v1002 = vsel %vm1000, %v1001, %v992
        %v1003 = vsel %vm996, %v999, %v1002
        %v1004 = vsel %vm993, nan, %v1003
        %v1005 = vand.u32 2147483647, %v373
        %vm1006 = vcmp.le.f32.partialorder %v1005, 0.7853982
        %vm1007 = vcmp.lt.s32.totalorder %v373, 0
        %v1008 = vand.u32 %v373, 2139095040
        %v1009 = vshrl.u32 %v1008, 23
        %v1010 = vsub.s32 %v1009, 127
        %v1011 = vand.u32 2147483647, %v373
        %v1012 = vand.u32 %v1011, 8388607
        %v1013 = vor.u32 %v1012, 8388608
        %v1014 = vsub.s32 0, %v1013
        %v1015 = vadd.s32 %v1010, 1
        %vm1016 = vcmp.gt.s32.totalorder %v1015, 0
        %v1017 = vsel %vm1016, %v1015, 0
        %v1018 = vshrl.u32 %v1017, 5
        %v1019 = vand.u32 %v1017, 31
        %v1020 = vsub.s32 32, %v1019
        %v1021 = vshrl.u32 683565275, %v1020
        %v1022 = vshll.u32 683565275, %v1019
        %v1023 = vshrl.u32 2475754826, %v1020
        %v1024 = vor.u32 %v1022, %v1023
        %v1025 = vshll.u32 2475754826, %v1019
        %v1026 = vshrl.u32 2131351028, %v1020
        %v1027 = vor.u32 %v1025, %v1026
        %v1028 = vshll.u32 2131351028, %v1019
        %v1029 = vshrl.u32 2102212464, %v1020
        %v1030 = vor.u32 %v1028, %v1029
        %v1031 = vshll.u32 2102212464, %v1019
        %v1032 = vshrl.u32 920167782, %v1020
        %v1033 = vor.u32 %v1031, %v1032
        %v1034 = vshll.u32 920167782, %v1019
        %v1035 = vshrl.u32 1326507024, %v1020
        %v1036 = vor.u32 %v1034, %v1035
        %vm1037 = vcmp.lt.s32.totalorder %v1018, 1
        %vm1038 = vcmp.lt.s32.totalorder %v1018, 2
        %vm1039 = vcmp.lt.s32.totalorder %v1018, 3
        %vm1040 = vcmp.lt.s32.totalorder %v1018, 4
        %v1041 = vsel %vm1037, %v1021, %v1024
        %v1042 = vsel %vm1040, %v1030, 2102212464
        %v1043 = vsel %vm1039, %v1027, %v1042
        %v1044 = vsel %vm1038, %v1041, %v1043
        %v1045 = vsel %vm1037, %v1024, %v1027
        %v1046 = vsel %vm1040, %v1033, 920167782
        %v1047 = vsel %vm1039, %v1030, %v1046
        %v1048 = vsel %vm1038, %v1045, %v1047
        %v1049 = vsel %vm1037, %v1027, %v1030
        %v1050 = vsel %vm1040, %v1036, 1326507024
        %v1051 = vsel %vm1039, %v1033, %v1050
        %v1052 = vsel %vm1038, %v1049, %v1051
        %v1053 = vshll.u32 %v1013, 8
        %v1054 = vmul.u32.u64.compose %v1053, %v1052
        %v1055 = vextract.low.u32 %v1054
        %v1056 = vextract.high.u32 %v1054
        %v1057 = vmul.u32.u64.compose %v1053, %v1048
        %v1058 = vextract.low.u32 %v1057
        %v1059 = vextract.high.u32 %v1057
        %v1060 = vmul.u32 %v1053, %v1044
        %v1061 = vadd.s32 %v1056, %v1058
        %vm1062 = vc.u32 %v1056, %v1058
        %v1063 = vadd.s32 %v1059, 1
        %v1064 = vsel %vm1062, %v1063, %v1059
        %v1065 = vadd.s32 %v1060, %v1064
        %v1066 = vadd.s32 %v1065, 536870912
        %v1067 = vshrl.u32 %v1066, 30
        %v1068 = vshll.u32 %v1067, 30
        %v1069 = vsub.s32 %v1065, %v1068
        %vm1070 = vcmp.lt.s32.totalorder %v1069, 0
        %v1071 = vsub.s32 0, %v1069
        %v1072 = vsel %vm1070, %v1071, %v1069
        %v1073 = vclz %v1072
        %v1074 = vsub.s32 %v1073, 2
        %vm1075 = vcmp.gt.s32.totalorder 0, %v1074
        %v1076 = vsel %vm1075, 0, %v1074
        %v1077 = vsub.s32 32, %v1076
        %v1078 = vshll.u32 %v1069, %v1076
        %v1079 = vshrl.u32 %v1061, %v1077
        %v1080 = vor.u32 %v1078, %v1079
        %v1081 = vsub.s32 4294967266, %v1076
        %v1082 = vadd.s32 %v1081, 127
        %v1083 = vshll.u32 %v1082, 23
        %v1084 = vor.u32 4788187, %v1083
        %v1085 = vand.u32 2147483647, %v1084
        %v1087 = vcvt.s32.f32 %v1080
        %v1088 = vmul.f32 %v1087, %v1085
        %v1089 = vxor.u32 %v1088, 2147483648
        %v1090 = vsel %vm1007, %v1089, %v1088
        %v1091 = vsub.s32 4, %v1067
        %v1092 = vsel %vm1007, %v1091, %v1067
        %v1093 = vsel %vm1006, %v373, %v1090
        %v1094 = vsel %vm1006, 0, %v1092
        %v1095 = vcosq.f32.pop %v1093
        %v1096 = vsinq.f32.pop %v1093
        %vm1097 = vweird.f32 %v373
        %v1098 = vadd.s32 %v1094, 3
        %v1099 = vand.u32 %v1098, 3
        %vm1100 = vcmp.lt.s32.totalorder %v1099, 2
        %vm1101 = vcmp.eq.s32.totalorder %v1099, 0
        %v1102 = vxor.u32 %v1096, 2147483648
        %v1103 = vsel %vm1101, %v1095, %v1102
        %vm1104 = vcmp.eq.s32.totalorder %v1099, 2
        %v1105 = vxor.u32 %v1095, 2147483648
        %v1106 = vsel %vm1104, %v1105, %v1096
        %v1107 = vsel %vm1100, %v1103, %v1106
        %v1108 = vsel %vm1097, nan, %v1107
        %v1109 = vand.u32 2147483647, %v378
        %vm1110 = vcmp.le.f32.partialorder %v1109, 0.7853982
        %vm1111 = vcmp.lt.s32.totalorder %v378, 0
        %v1112 = vand.u32 %v378, 2139095040
        %v1113 = vshrl.u32 %v1112, 23
        %v1114 = vsub.s32 %v1113, 127
        %v1115 = vand.u32 2147483647, %v378
        %v1116 = vand.u32 %v1115, 8388607
        %v1117 = vor.u32 %v1116, 8388608
        %v1118 = vsub.s32 0, %v1117
        %v1119 = vadd.s32 %v1114, 1
        %vm1120 = vcmp.gt.s32.totalorder %v1119, 0
        %v1121 = vsel %vm1120, %v1119, 0
        %v1122 = vshrl.u32 %v1121, 5
        %v1123 = vand.u32 %v1121, 31
        %v1124 = vsub.s32 32, %v1123
        %v1125 = vshrl.u32 683565275, %v1124
        %v1126 = vshll.u32 683565275, %v1123
        %v1127 = vshrl.u32 2475754826, %v1124
        %v1128 = vor.u32 %v1126, %v1127
        %v1129 = vshll.u32 2475754826, %v1123
        %v1130 = vshrl.u32 2131351028, %v1124
        %v1131 = vor.u32 %v1129, %v1130
        %v1132 = vshll.u32 2131351028, %v1123
        %v1133 = vshrl.u32 2102212464, %v1124
        %v1134 = vor.u32 %v1132, %v1133
        %v1135 = vshll.u32 2102212464, %v1123
        %v1136 = vshrl.u32 920167782, %v1124
        %v1137 = vor.u32 %v1135, %v1136
        %v1138 = vshll.u32 920167782, %v1123
        %v1139 = vshrl.u32 1326507024, %v1124
        %v1140 = vor.u32 %v1138, %v1139
        %vm1141 = vcmp.lt.s32.totalorder %v1122, 1
        %vm1142 = vcmp.lt.s32.totalorder %v1122, 2
        %vm1143 = vcmp.lt.s32.totalorder %v1122, 3
        %vm1144 = vcmp.lt.s32.totalorder %v1122, 4
        %v1145 = vsel %vm1141, %v1125, %v1128
        %v1146 = vsel %vm1144, %v1134, 2102212464
        %v1147 = vsel %vm1143, %v1131, %v1146
        %v1148 = vsel %vm1142, %v1145, %v1147
        %v1149 = vsel %vm1141, %v1128, %v1131
        %v1150 = vsel %vm1144, %v1137, 920167782
        %v1151 = vsel %vm1143, %v1134, %v1150
        %v1152 = vsel %vm1142, %v1149, %v1151
        %v1153 = vsel %vm1141, %v1131, %v1134
        %v1154 = vsel %vm1144, %v1140, 1326507024
        %v1155 = vsel %vm1143, %v1137, %v1154
        %v1156 = vsel %vm1142, %v1153, %v1155
        %v1157 = vshll.u32 %v1117, 8
        %v1158 = vmul.u32.u64.compose %v1157, %v1156
        %v1159 = vextract.low.u32 %v1158
        %v1160 = vextract.high.u32 %v1158
        %v1161 = vmul.u32.u64.compose %v1157, %v1152
        %v1162 = vextract.low.u32 %v1161
        %v1163 = vextract.high.u32 %v1161
        %v1164 = vmul.u32 %v1157, %v1148
        %v1165 = vadd.s32 %v1160, %v1162
        %vm1166 = vc.u32 %v1160, %v1162
        %v1167 = vadd.s32 %v1163, 1
        %v1168 = vsel %vm1166, %v1167, %v1163
        %v1169 = vadd.s32 %v1164, %v1168
        %v1170 = vadd.s32 %v1169, 536870912
        %v1171 = vshrl.u32 %v1170, 30
        %v1172 = vshll.u32 %v1171, 30
        %v1173 = vsub.s32 %v1169, %v1172
        %vm1174 = vcmp.lt.s32.totalorder %v1173, 0
        %v1175 = vsub.s32 0, %v1173
        %v1176 = vsel %vm1174, %v1175, %v1173
        %v1177 = vclz %v1176
        %v1178 = vsub.s32 %v1177, 2
        %vm1179 = vcmp.gt.s32.totalorder 0, %v1178
        %v1180 = vsel %vm1179, 0, %v1178
        %v1181 = vsub.s32 32, %v1180
        %v1182 = vshll.u32 %v1173, %v1180
        %v1183 = vshrl.u32 %v1165, %v1181
        %v1184 = vor.u32 %v1182, %v1183
        %v1185 = vsub.s32 4294967266, %v1180
        %v1186 = vadd.s32 %v1185, 127
        %v1187 = vshll.u32 %v1186, 23
        %v1188 = vor.u32 4788187, %v1187
        %v1189 = vand.u32 2147483647, %v1188
        %v1191 = vcvt.s32.f32 %v1184
        %v1192 = vmul.f32 %v1191, %v1189
        %v1193 = vxor.u32 %v1192, 2147483648
        %v1194 = vsel %vm1111, %v1193, %v1192
        %v1195 = vsub.s32 4, %v1171
        %v1196 = vsel %vm1111, %v1195, %v1171
        %v1197 = vsel %vm1110, %v378, %v1194
        %v1198 = vsel %vm1110, 0, %v1196
        %v1199 = vcosq.f32.pop %v1197
        %v1200 = vsinq.f32.pop %v1197
        %vm1201 = vweird.f32 %v378
        %v1202 = vadd.s32 %v1198, 3
        %v1203 = vand.u32 %v1202, 3
        %vm1204 = vcmp.lt.s32.totalorder %v1203, 2
        %vm1205 = vcmp.eq.s32.totalorder %v1203, 0
        %v1206 = vxor.u32 %v1200, 2147483648
        %v1207 = vsel %vm1205, %v1199, %v1206
        %vm1208 = vcmp.eq.s32.totalorder %v1203, 2
        %v1209 = vxor.u32 %v1199, 2147483648
        %v1210 = vsel %vm1208, %v1209, %v1200
        %v1211 = vsel %vm1204, %v1207, %v1210
        %v1212 = vsel %vm1201, nan, %v1211
        %1213 = vst [vmem:[%s164] sm:$0xff] %v484
        %1214 = vst [vmem:[%s164 + $0x8] sm:$0xff] %v588
        %1215 = vst [vmem:[%s164 + $0x10] sm:$0xff] %v692
        %1216 = vst [vmem:[%s164 + $0x18] sm:$0xff] %v796
        %1217 = vst [vmem:[%s164 + $0x20] sm:$0xff] %v900
        %1218 = vst [vmem:[%s164 + $0x28] sm:$0xff] %v1004
        %1219 = vst [vmem:[%s164 + $0x30] sm:$0xff] %v1108
        %1220 = vst [vmem:[%s164 + $0x38] sm:$0xff] %v1212
        %s1221 = sand.u32 %s93, 1
        %s1222 = scalar_lea.sflag [#allocation3], %s1221
        %s1223 = sand.u32 %s93, 1
        %s1224 = smul.addr %s1223, 64
        %s1225 = scalar_lea.vmem [#allocation2], %s1224
        // Predicated region
        $region33: #{tpu_custom_call.1} parent=31 // pred_check
          %p1226 = pneg %p103
        $region34: #{tpu_custom_call.1} parent=31 // pred_check_branch
          %1228 = sbr.rel (%p1226) target = $region36
        $region35: #{tpu_custom_call.1} parent=31 // pred_region
          %s1229 = smul.u32 8, %s17
          %s1231 = ssub.s32 1024, 1024
          %1232 = vsyncadd %s1222, %s1231
          %s1233 = smul.addr %s1229, 128
          %s1234 = scalar_lea.hbm %s3, %s1233
          %s1235 = sshll.u32 %s1225, 4
          %s1236 = int_to_ptr.vmem [resolvable:$true] %s1235
          %1241 = dma.vmem_to_hbm [thread:$0]  %s1236, 1024, %s1234, %s1222, 128, 128, 8
        $region36: #{tpu_custom_call.1} parent=31 // pred_fallthru
          _
      $region32: #{tpu_custom_call.1} parent=5 // pred_fallthru
        _
      %p1242 = scmp.le.s32.totalorder 2, %s12
      // Predicated region
      $region37: #{tpu_custom_call.1} parent=5 // pred_check
        %p1243 = pneg %p1242
      $region38: #{tpu_custom_call.1} parent=5 // pred_check_branch
        %1245 = sbr.rel (%p1243) target = $region40
      $region39: #{tpu_custom_call.1} parent=5 // pred_region
        %s1246 = ssub.s32 %s12, 2
        // Predicated region
        $region41: #{tpu_custom_call.1} parent=39 // pred_check
          %p1247 = pneg %p109
        $region42: #{tpu_custom_call.1} parent=39 // pred_check_branch
          %1249 = sbr.rel (%p1247) target = $region44
        $region43: #{tpu_custom_call.1} parent=39 // pred_region
          %s1250 = sand.u32 %s94, 1
          %s1251 = scalar_lea.sflag [#allocation3], %s1250
          %s1252 = sand.u32 %s94, 1
          %s1253 = smul.addr %s1252, 64
          %s1254 = scalar_lea.vmem [#allocation2], %s1253
          %1255 = dma.done %s1251, 1024
        $region44: #{tpu_custom_call.1} parent=39 // pred_fallthru
          _
      $region40: #{tpu_custom_call.1} parent=5 // pred_fallthru
        _
    $region6: #{tpu_custom_call.1} parent=1 // loop_footer
      %s16 = sadd.s32 1, %s12
    $region7: #{tpu_custom_call.1} parent=1 // loop_footer_branch
      %11 = sbr.rel target = $region3
    $region8: #{tpu_custom_call.1} parent=1 // loop_exit
      _
    %1256 = vsyncpa [#allocation3], 1
    %s1257 = scalar_lea.sflag [#allocation3], 1
    %1258 = vsyncpa %s1257, 1

</llo_original>
